<compile_context>
chip_gen: v5e
topology: v5e:2x2
jax: 0.10.0
libtpu: 0.0.40
codegen_flags: <defaults>
</compile_context>

<pallas_src>
import functools

import jax
import jax.numpy as jnp
from jax.experimental import pallas as pl
from jax.experimental.pallas import tpu as pltpu

BN_EPS = 1e-5
LANE = 128
SUBLANE = 8


def _round_up(x, m):
    return (x + m - 1) // m * m


# ----------------------------- Pallas kernel -------------------------------- #

def _fused_dueling_kernel(x_ref, w_ref, b_ref, o_ref, *, layer_dims,
                          num_actions):
    """x -> [Linear(+folded BN) + ReLU]*L -> merged V/A head -> dueling Q.

    w_ref : [K_total, W] packed weight slab (compute dtype, e.g. bf16)
            layer i occupies rows [off, off+kin) and cols [0, kout).
    b_ref : [8, W] packed bias slab (f32); layer i bias is row i, cols [0, kout).
    Head (last entry of layer_dims) columns: [0, A) = advantage, A = value,
    remaining lanes zero-padded so the output store is a full-width vst.
    """
    compute_dtype = w_ref.dtype
    n_layers = len(layer_dims)

    h = x_ref[...]
    va = None
    for i, (off, kin, kout) in enumerate(layer_dims):   # unrolled at trace time
        w = w_ref[off:off + kin, :kout]                  # static slice
        b = b_ref[i:i + 1, :kout]                        # f32 bias row
        y = jnp.dot(h.astype(compute_dtype), w,
                    preferred_element_type=jnp.float32) + b
        if i < n_layers - 1:
            h = jnp.maximum(y, 0.0)                      # shared layer (+ReLU)
        else:
            va = y                                       # merged V/A head, f32

    lane = jax.lax.broadcasted_iota(jnp.int32, va.shape, 1)
    adv_mask = lane < num_actions
    adv_mean = jnp.sum(jnp.where(adv_mask, va, 0.0),
                       axis=-1, keepdims=True) * (1.0 / num_actions)
    value = va[:, num_actions:num_actions + 1]           # [B, 1]

    # Columns [0, A) hold Q = value + (adv - mean(adv)); remaining lanes are
    # junk and get sliced away in the wrapper.  Store is full-width (unmasked).
    o_ref[...] = va + value - adv_mean


# ------------------- One-time parameter folding / packing -------------------- #

def prepare_params(params, compute_dtype=jnp.bfloat16):
    """Fold eval-mode BatchNorm into each Linear, merge the V/A heads into one
    lane-dense head matrix, and pack everything into two contiguous slabs.

    Call this ONCE (outside the per-step jitted forward).
    Note: folding uses rsqrt(var+eps); the reference divides by sqrt(var+eps)
    (difference ~1e-7 relative).
    """
    layers = []
    for layer in params["shared"]:
        scale = layer["gamma"] * jax.lax.rsqrt(layer["var"] + BN_EPS)
        w = layer["w"] * scale                                   # [in, H]*[1, H]
        b = (layer["b"] - layer["mean"]) * scale + layer["beta"]
        layers.append((w, b))

    wa, ba = params["wa"], params["ba"]
    wv, bv = params["wv"], params["bv"]
    H, A = wa.shape
    head_pad = _round_up(A + 1, LANE)
    w_head = jnp.zeros((H, head_pad), jnp.float32)
    w_head = w_head.at[:, :A].set(wa).at[:, A:A + 1].set(wv)
    b_head = jnp.zeros((1, head_pad), jnp.float32)
    b_head = b_head.at[:, :A].set(ba).at[:, A:A + 1].set(bv)
    layers.append((w_head, b_head))

    slab_cols = _round_up(max(w.shape[1] for w, _ in layers), LANE)

    # Row layout: each layer's in-dim block rounded up to the sublane multiple.
    dims = []
    row = 0
    for w, _ in layers:
        kin, kout = w.shape
        dims.append((row, kin, kout))
        row += _round_up(kin, SUBLANE)
    total_rows = _round_up(row, SUBLANE)

    w_slab = jnp.zeros((total_rows, slab_cols), jnp.float32)
    b_slab = jnp.zeros((_round_up(len(layers), SUBLANE), slab_cols), jnp.float32)
    for i, ((w, b), (off, kin, kout)) in enumerate(zip(layers, dims)):
        w_slab = w_slab.at[off:off + kin, :kout].set(w)
        b_slab = b_slab.at[i:i + 1, :kout].set(b)

    w_slab = w_slab.astype(compute_dtype)   # matmul inputs; bias stays f32

    meta = {
        "layer_dims": tuple(dims),
        "num_actions": A,
        "head_pad": head_pad,
    }
    return w_slab, b_slab, meta


# ------------------------------ Tile selection -------------------------------- #

def _is_v7x():
    try:
        kind = jax.devices()[0].device_kind.lower().replace(" ", "")
    except Exception:
        return False
    return ("v7" in kind) or ("tpu7" in kind)


def _default_tile_b(B):
    # Fewest possible grid steps (per-step overhead ~0.35us dwarfs the compute).
    tile = min(_round_up(B, SUBLANE), 512)
    # v7x has 2 TensorCores: keep >= 2 "parallel" grid steps once B >= 16 so
    # both cores get work; no effect (and not applied) on v5e/v6e.
    if B >= 16 and _is_v7x():
        tile = min(tile, _round_up(pl.cdiv(B, 2), SUBLANE))
    return tile


# ------------------------------ JAX wrapper ---------------------------------- #

def dueling_qnet_forward(x, w_slab, b_slab, *, meta, tile_b=None):
    """Fused forward pass of DuelingQNet (eval-mode BN folded into weights)."""
    B, F = x.shape
    A = meta["num_actions"]
    head_pad = meta["head_pad"]
    layer_dims = meta["layer_dims"]

    if tile_b is None:
        tile_b = _default_tile_b(B)
    else:
        tile_b = _round_up(int(tile_b), SUBLANE)   # sublane constraint

    b_pad = _round_up(B, tile_b)
    if b_pad != B:                                  # skipped when B % tile_b == 0
        x = jnp.pad(x, ((0, b_pad - B), (0, 0)))
    grid = (b_pad // tile_b,)

    kernel = functools.partial(_fused_dueling_kernel,
                               layer_dims=layer_dims, num_actions=A)

    out = pl.pallas_call(
        kernel,
        grid=grid,
        in_specs=[
            pl.BlockSpec((tile_b, F), lambda i: (i, 0)),
            # Weight/bias slabs stay resident (constant block index; Mosaic
            # elides re-fetch across grid steps).
            pl.BlockSpec(w_slab.shape, lambda i: (0, 0)),
            pl.BlockSpec(b_slab.shape, lambda i: (0, 0)),
        ],
        out_specs=pl.BlockSpec((tile_b, head_pad), lambda i: (i, 0)),
        out_shape=jax.ShapeDtypeStruct((b_pad, head_pad), jnp.float32),
        compiler_params=pltpu.CompilerParams(
            dimension_semantics=("parallel",)),
    )(x, w_slab, b_slab)

    # Lane-dense padded slab -> [B, A] Q-values (consumers that can index the
    # slab directly may skip this slice to save one small HBM copy).
    return out[:B, :A]


# -------------------------- Parameter construction --------------------------- #

def _init_linear(key, fan_in, fan_out):
    # PyTorch nn.Linear default init: U(-1/sqrt(fan_in), 1/sqrt(fan_in))
    kw, kb = jax.random.split(key)
    bound = 1.0 / jnp.sqrt(jnp.float32(fan_in))
    w = jax.random.uniform(kw, (fan_in, fan_out), jnp.float32, -bound, bound)
    b = jax.random.uniform(kb, (1, fan_out), jnp.float32, -bound, bound)
    return w, b


def make_params(key, input_size, output_size, hidden_units):
    keys = jax.random.split(key, len(hidden_units) + 2)
    shared = []
    fan_in = input_size
    for i, h in enumerate(hidden_units):
        w, b = _init_linear(keys[i], fan_in, h)
        shared.append({
            "w": w, "b": b,
            # BatchNorm1d parameters / running stats (eval semantics).
            # TODO(synk): training-mode BN (batch statistics + running-stat
            # updates) is not implemented in the kernel.
            "gamma": jnp.ones((1, h), jnp.float32),
            "beta": jnp.zeros((1, h), jnp.float32),
            "mean": jnp.zeros((1, h), jnp.float32),
            "var": jnp.ones((1, h), jnp.float32),
        })
        fan_in = h
    wv, bv = _init_linear(keys[-2], fan_in, 1)
    wa, ba = _init_linear(keys[-1], fan_in, output_size)
    return {"shared": shared, "wv": wv, "bv": bv, "wa": wa, "ba": ba}


# ----------------------------- Pure-JAX reference ----------------------------- #

def reference_forward(x, params):
    h = x
    for layer in params["shared"]:
        y = h @ layer["w"] + layer["b"]
        y = (y - layer["mean"]) / jnp.sqrt(layer["var"] + BN_EPS) \
            * layer["gamma"] + layer["beta"]
        h = jnp.maximum(y, 0.0)
    value = h @ params["wv"] + params["bv"]
    adv = h @ params["wa"] + params["ba"]
    adv = adv - jnp.mean(adv, axis=1, keepdims=True)
    return value + adv


# ---------------------------------- main -------------------------------------- #

if __name__ == "__main__":
    key = jax.random.PRNGKey(0)
    k_x, k_p = jax.random.split(key)

    batch = 8
    input_size = 32
    hidden_units = [64, 32]
    output_size = 8

    x = jax.random.normal(k_x, (batch, input_size), jnp.float32)
    params = make_params(k_p, input_size, output_size, hidden_units)
    ref = reference_forward(x, params)

    # Float32 compute path: tight check against the pure-JAX reference.
    w32, b32, meta32 = prepare_params(params, compute_dtype=jnp.float32)
    fwd32 = jax.jit(functools.partial(dueling_qnet_forward, meta=meta32))
    out32 = jax.block_until_ready(fwd32(x, w32, b32))
    assert out32.shape == (batch, output_size)
    assert jnp.allclose(out32, ref, atol=1e-4, rtol=1e-3), "f32 mismatch vs reference"

    # Default bf16-matmul path: same semantics within bf16 rounding.
    wbf, bbf, metabf = prepare_params(params)   # compute_dtype=bfloat16
    fwdbf = jax.jit(functools.partial(dueling_qnet_forward, meta=metabf))
    outbf = jax.block_until_ready(fwdbf(x, wbf, bbf))
    assert outbf.shape == (batch, output_size)
    assert jnp.allclose(outbf, ref, atol=3e-2, rtol=3e-2), "bf16 mismatch vs reference"

    print("KERNEL_OK")
</pallas_src>

<mosaic_0001>
module attributes {stable_mosaic.version = 11 : i64} {
  func.func @_fused_dueling_kernel(%arg0: i32, %arg1: memref<8x32xf32, #tpu.memory_space<vmem>>, %arg2: memref<128x128xf32, #tpu.memory_space<vmem>>, %arg3: memref<8x128xf32, #tpu.memory_space<vmem>>, %arg4: memref<8x128xf32, #tpu.memory_space<vmem>>) attributes {dimension_semantics = [#tpu.dimension_semantics<parallel>], iteration_bounds = array<i64: 1>, scalar_prefetch = 0 : i64, scratch_operands = 0 : i64, tpu.core_type = #tpu.core_type<tc>, window_params = [{transform_indices = @transform_0, window_bounds = array<i64: 8, 32>}, {pipeline_mode = #tpu.pipeline_mode<synchronous>, transform_indices = @transform_1, window_bounds = array<i64: 128, 128>}, {pipeline_mode = #tpu.pipeline_mode<synchronous>, transform_indices = @transform_2, window_bounds = array<i64: 8, 128>}, {transform_indices = @transform_3, window_bounds = array<i64: 8, 128>}]} {
    %c0 = arith.constant 0 : index
    %c0_0 = arith.constant 0 : index
    %0 = vector.load %arg1[%c0, %c0_0] : memref<8x32xf32, #tpu.memory_space<vmem>>, vector<8x32xf32>
    %c0_1 = arith.constant 0 : index
    %c0_2 = arith.constant 0 : index
    %1 = vector.load %arg2[%c0_1, %c0_2] : memref<128x128xf32, #tpu.memory_space<vmem>>, vector<32x64xf32>
    %c0_3 = arith.constant 0 : index
    %c0_4 = arith.constant 0 : index
    %2 = vector.load %arg3[%c0_3, %c0_4] : memref<8x128xf32, #tpu.memory_space<vmem>>, vector<1x64xf32>
    %cst = arith.constant dense<0.000000e+00> : vector<8x64xf32>
    %3 = tpu.matmul %0, %1, %cst {dimension_numbers = #tpu.dot_dimension_numbers<[1], [0], [0], [1], [0, 0, 1, 1], [], []>} : vector<8x32xf32>, vector<32x64xf32>, vector<8x64xf32> -> vector<8x64xf32>
    %4 = vector.broadcast %2 : vector<1x64xf32> to vector<8x64xf32>
    %5 = arith.addf %3, %4 : vector<8x64xf32>
    %cst_5 = arith.constant 0.000000e+00 : f32
    %6 = vector.broadcast %cst_5 : f32 to vector<8x64xf32>
    %7 = arith.maximumf %5, %6 : vector<8x64xf32>
    %c32 = arith.constant 32 : index
    %c0_6 = arith.constant 0 : index
    %8 = vector.load %arg2[%c32, %c0_6] : memref<128x128xf32, #tpu.memory_space<vmem>>, vector<64x32xf32>
    %c1 = arith.constant 1 : index
    %c0_7 = arith.constant 0 : index
    %9 = vector.load %arg3[%c1, %c0_7] : memref<8x128xf32, #tpu.memory_space<vmem>>, vector<1x32xf32>
    %cst_8 = arith.constant dense<0.000000e+00> : vector<8x32xf32>
    %10 = tpu.matmul %7, %8, %cst_8 {dimension_numbers = #tpu.dot_dimension_numbers<[1], [0], [0], [1], [0, 0, 1, 1], [], []>} : vector<8x64xf32>, vector<64x32xf32>, vector<8x32xf32> -> vector<8x32xf32>
    %11 = vector.broadcast %9 : vector<1x32xf32> to vector<8x32xf32>
    %12 = arith.addf %10, %11 : vector<8x32xf32>
    %cst_9 = arith.constant 0.000000e+00 : f32
    %13 = vector.broadcast %cst_9 : f32 to vector<8x32xf32>
    %14 = arith.maximumf %12, %13 : vector<8x32xf32>
    %c96 = arith.constant 96 : index
    %c0_10 = arith.constant 0 : index
    %15 = vector.load %arg2[%c96, %c0_10] : memref<128x128xf32, #tpu.memory_space<vmem>>, vector<32x128xf32>
    %c2 = arith.constant 2 : index
    %c0_11 = arith.constant 0 : index
    %16 = vector.load %arg3[%c2, %c0_11] : memref<8x128xf32, #tpu.memory_space<vmem>>, vector<1x128xf32>
    %cst_12 = arith.constant dense<0.000000e+00> : vector<8x128xf32>
    %17 = tpu.matmul %14, %15, %cst_12 {dimension_numbers = #tpu.dot_dimension_numbers<[1], [0], [0], [1], [0, 0, 1, 1], [], []>} : vector<8x32xf32>, vector<32x128xf32>, vector<8x128xf32> -> vector<8x128xf32>
    %18 = vector.broadcast %16 : vector<1x128xf32> to vector<8x128xf32>
    %19 = arith.addf %17, %18 : vector<8x128xf32>
    %20 = tpu.iota {dimensions = array<i32: 1>} : vector<8x128xi32>
    %c8_i32 = arith.constant 8 : i32
    %21 = vector.broadcast %c8_i32 : i32 to vector<8x128xi32>
    %22 = arith.cmpi slt, %20, %21 : vector<8x128xi32>
    %cst_13 = arith.constant 0.000000e+00 : f32
    %23 = vector.broadcast %cst_13 : f32 to vector<8x128xf32>
    %24 = arith.select %22, %19, %23 : vector<8x128xi1>, vector<8x128xf32>
    %cst_14 = arith.constant dense<0.000000e+00> : vector<8xf32>
    %25 = vector.multi_reduction <add>, %24, %cst_14 [1] : vector<8x128xf32> to vector<8xf32>
    %26 = vector.shape_cast %25 : vector<8xf32> to vector<8x1xf32>
    %cst_15 = arith.constant 1.250000e-01 : f32
    %27 = vector.broadcast %cst_15 : f32 to vector<8x1xf32>
    %28 = arith.mulf %26, %27 : vector<8x1xf32>
    %29 = vector.extract_strided_slice %19 {offsets = [0, 8], sizes = [8, 1], strides = [1, 1]} : vector<8x128xf32> to vector<8x1xf32>
    %30 = vector.broadcast %29 : vector<8x1xf32> to vector<8x128xf32>
    %31 = arith.addf %19, %30 : vector<8x128xf32>
    %32 = vector.broadcast %28 : vector<8x1xf32> to vector<8x128xf32>
    %33 = arith.subf %31, %32 : vector<8x128xf32>
    %c0_16 = arith.constant 0 : index
    %c0_17 = arith.constant 0 : index
    %34 = vector.load %arg4[%c0_16, %c0_17] : memref<8x128xf32, #tpu.memory_space<vmem>>, vector<8x128xf32>
    tpu.vector_store %arg4[%c0_16, %c0_17], %33 {strides = array<i32>} : memref<8x128xf32, #tpu.memory_space<vmem>>, vector<8x128xf32>,
    return
  }
  func.func @transform_0(%arg0: i32) -> (i32, i32) {
    %c0_i32 = arith.constant 0 : i32
    %c0_i32_0 = arith.constant 0 : i32
    return %arg0, %c0_i32 : i32, i32
  }
  func.func @transform_1(%arg0: i32) -> (i32, i32) {
    %c0_i32 = arith.constant 0 : i32
    %c0_i32_0 = arith.constant 0 : i32
    %c0_i32_1 = arith.constant 0 : i32
    return %c0_i32, %c0_i32_0 : i32, i32
  }
  func.func @transform_2(%arg0: i32) -> (i32, i32) {
    %c0_i32 = arith.constant 0 : i32
    %c0_i32_0 = arith.constant 0 : i32
    %c0_i32_1 = arith.constant 0 : i32
    return %c0_i32, %c0_i32_0 : i32, i32
  }
  func.func @transform_3(%arg0: i32) -> (i32, i32) {
    %c0_i32 = arith.constant 0 : i32
    %c0_i32_0 = arith.constant 0 : i32
    return %arg0, %c0_i32 : i32, i32
  }
}

</mosaic_0001>

<llo_original>
// kernel: dueling_qnet_forward.1
$region0: #{dueling_qnet_forward.1}
  #allocation0 [shape = 'u32[]', space=smem, size = 0x4, offset = 0x4, fixed_abs, tag = 'smem constant byte address 0x4 - core index']
  #allocation1 [shape = 'u32[72,128]{1,0:T(1,128)}', space=vmem, size = 0x9000, scoped, tag = 'internal scratch']
  %s0 = inlined_call_operand.hbm [shape: f32[8,32], index: 0, kind: input, shape index: {}]
  %s1 = inlined_call_operand.hbm [shape: f32[128,128], index: 1, kind: input, shape index: {}]
  %s2 = inlined_call_operand.hbm [shape: f32[8,128], index: 2, kind: input, shape index: {}]
  %s3 = inlined_call_operand.hbm [shape: f32[8,128], index: 3, kind: output, shape index: {}]
  %s4 = sld [smem:[#allocation0]]
  $region34: #{dueling_qnet_forward.1} parent=0
    _
  %s6 = ssub.s32 1, %s4
  %s7 = scalar_select 0, %s6, %s4
  $region1: #{dueling_qnet_forward.1} parent=0
    #allocation2 [shape = 'u8[4096]{0}', space=vmem, size = 0x1000, scoped, tag = 'input window, operand 0, single buffered']
    #allocation3 [shape = 's32[1]{0}', space=sflag, size = 0x4, scoped, tag = 'scoped memory for dueling_qnet_forward.1']
    #allocation4 [shape = 's32[1]{0}', space=sflag, size = 0x4, scoped, tag = 'scoped memory for dueling_qnet_forward.1']
    #allocation5 [shape = 'u8[65536]{0}', space=vmem, size = 0x10000, scoped, tag = 'input window, operand 1, single buffered']
    #allocation6 [shape = 's32[1]{0}', space=sflag, size = 0x4, scoped, tag = 'scoped memory for dueling_qnet_forward.1']
    #allocation7 [shape = 'u8[4096]{0}', space=vmem, size = 0x1000, scoped, tag = 'input window, operand 2, single buffered']
    #allocation8 [shape = 'u8[4096]{0}', space=vmem, size = 0x1000, scoped, tag = 'output window, operand 0, single buffered']
    %8 = vsyncpa [#allocation3], 0
    %9 = vsyncpa [#allocation6], 0
    %10 = vsyncpa [#allocation4], 0
    // Predicated region
    $region2: #{dueling_qnet_forward.1} parent=1 // pred_check
      _
    $region3: #{dueling_qnet_forward.1} parent=1 // pred_check_branch
      %12 = sbr.rel (0) target = $region5
    $region4: #{dueling_qnet_forward.1} parent=1 // pred_region
      %14 = vsyncadd [#allocation3], 0
      %s16 = sshll.u32 %s0, 4
      %s17 = int_to_ptr.hbm [resolvable:$true] %s16
      %s18 = sshll.u32 [#allocation2], 4
      %s19 = int_to_ptr.vmem [resolvable:$true] %s18
      %21 = dma.hbm_to_vmem [thread:$0]  %s17, 128, %s19, [#allocation3]
    $region5: #{dueling_qnet_forward.1} parent=1 // pred_fallthru
      _
    // Predicated region
    $region6: #{dueling_qnet_forward.1} parent=1 // pred_check
      _
    $region7: #{dueling_qnet_forward.1} parent=1 // pred_check_branch
      %23 = sbr.rel (0) target = $region9
    $region8: #{dueling_qnet_forward.1} parent=1 // pred_region
      %25 = vsyncadd [#allocation6], 0
      %s26 = sshll.u32 %s1, 4
      %s27 = int_to_ptr.hbm [resolvable:$true] %s26
      %s28 = sshll.u32 [#allocation5], 4
      %s29 = int_to_ptr.vmem [resolvable:$true] %s28
      %34 = dma.hbm_to_vmem [thread:$0]  %s27, 2048, %s29, [#allocation6], 128, 128, 8
    $region9: #{dueling_qnet_forward.1} parent=1 // pred_fallthru
      _
    // Predicated region
    $region10: #{dueling_qnet_forward.1} parent=1 // pred_check
      _
    $region11: #{dueling_qnet_forward.1} parent=1 // pred_check_branch
      %36 = sbr.rel (0) target = $region13
    $region12: #{dueling_qnet_forward.1} parent=1 // pred_region
      %38 = vsyncadd [#allocation6], 0
      %s40 = sshll.u32 %s2, 4
      %s41 = int_to_ptr.hbm [resolvable:$true] %s40
      %s42 = sshll.u32 [#allocation7], 4
      %s43 = int_to_ptr.vmem [resolvable:$true] %s42
      %45 = dma.hbm_to_vmem [thread:$0]  %s41, 128, %s43, [#allocation6]
    $region13: #{dueling_qnet_forward.1} parent=1 // pred_fallthru
      _
    // Predicated region
    $region14: #{dueling_qnet_forward.1} parent=1 // pred_check
      _
    $region15: #{dueling_qnet_forward.1} parent=1 // pred_check_branch
      %47 = sbr.rel (0) target = $region17
    $region16: #{dueling_qnet_forward.1} parent=1 // pred_region
      %49 = dma.done [#allocation3], 128
    $region17: #{dueling_qnet_forward.1} parent=1 // pred_fallthru
      _
    // Predicated region
    $region18: #{dueling_qnet_forward.1} parent=1 // pred_check
      _
    $region19: #{dueling_qnet_forward.1} parent=1 // pred_check_branch
      %51 = sbr.rel (0) target = $region21
    $region20: #{dueling_qnet_forward.1} parent=1 // pred_region
      %53 = dma.done [#allocation6], 2048
    $region21: #{dueling_qnet_forward.1} parent=1 // pred_fallthru
      _
    // Predicated region
    $region22: #{dueling_qnet_forward.1} parent=1 // pred_check
      _
    $region23: #{dueling_qnet_forward.1} parent=1 // pred_check_branch
      %55 = sbr.rel (0) target = $region25
    $region24: #{dueling_qnet_forward.1} parent=1 // pred_region
      %57 = dma.done [#allocation6], 128
    $region25: #{dueling_qnet_forward.1} parent=1 // pred_fallthru
      _
    %v58 = vld [vmem:[#allocation2] sm:$0xff]
    %v59 = vld [vmem:[#allocation5] sm:$0xff]
    %v60 = vld [vmem:[#allocation5 + $0x8] sm:$0xff]
    %v61 = vld [vmem:[#allocation5 + $0x10] sm:$0xff]
    %v62 = vld [vmem:[#allocation5 + $0x18] sm:$0xff]
    %v63 = vld [vmem:[#allocation7] sm:$0x1]
    %v64 = vperm.slane %v63, 0
    %vm65 = vcmask 261120
    %v67 = vsel %vm65, %v58, 0
    %69 = vmatpush.msra.mxu0 0.0
    %70 = vmatpush.msra.mxu0 0.0
    %71 = vmatpush.msra.mxu0 0.0
    %72 = vmatpush.msra.mxu0 0.0
    %73 = vmatpush.msra.mxu0 0.0
    %74 = vmatpush.msra.mxu0 0.0
    %75 = vmatpush.msra.mxu0 0.0
    %76 = vmatpush.msra.mxu0 0.0
    %77 = vmatpush.msra.mxu0 0.0
    %78 = vmatpush.msra.mxu0 0.0
    %79 = vmatpush.msra.mxu0 0.0
    %80 = vmatpush.msra.mxu0 0.0
    %81 = vmatpush.msra.mxu0 %v62
    %82 = vmatpush.msra.mxu0 %v61
    %83 = vmatpush.msra.mxu0 %v60
    %84 = vmatpush.msra.mxu0 %v59
    %85 = vmatmul.f32.gmra.mxu0 %v67
    %v86 = vpop.f32.mrf.mxu0
    %v87 = vadd.f32 %v64, %v86
    %88 = vdwg.mxu0
    %v89 = vmax.f32 %v87, 0.0
    %v90 = vld [vmem:[#allocation5 + $0x20] sm:$0xff]
    %v91 = vld [vmem:[#allocation5 + $0x28] sm:$0xff]
    %v92 = vld [vmem:[#allocation5 + $0x30] sm:$0xff]
    %v93 = vld [vmem:[#allocation5 + $0x38] sm:$0xff]
    %v94 = vld [vmem:[#allocation5 + $0x40] sm:$0xff]
    %v95 = vld [vmem:[#allocation5 + $0x48] sm:$0xff]
    %v96 = vld [vmem:[#allocation5 + $0x50] sm:$0xff]
    %v97 = vld [vmem:[#allocation5 + $0x58] sm:$0xff]
    %v98 = vld [vmem:[#allocation7 + $0x1] sm:$0x1]
    %v99 = vperm.slane %v98, 0
    %vm100 = vcmask 523264
    %v102 = vsel %vm100, %v89, 0
    %104 = vmatpush.msra.mxu0 0.0
    %105 = vmatpush.msra.mxu0 0.0
    %106 = vmatpush.msra.mxu0 0.0
    %107 = vmatpush.msra.mxu0 0.0
    %108 = vmatpush.msra.mxu0 0.0
    %109 = vmatpush.msra.mxu0 0.0
    %110 = vmatpush.msra.mxu0 0.0
    %111 = vmatpush.msra.mxu0 0.0
    %112 = vmatpush.msra.mxu0 %v97
    %113 = vmatpush.msra.mxu0 %v96
    %114 = vmatpush.msra.mxu0 %v95
    %115 = vmatpush.msra.mxu0 %v94
    %116 = vmatpush.msra.mxu0 %v93
    %117 = vmatpush.msra.mxu0 %v92
    %118 = vmatpush.msra.mxu0 %v91
    %119 = vmatpush.msra.mxu0 %v90
    %120 = vmatmul.f32.gmra.mxu0 %v102
    %v121 = vpop.f32.mrf.mxu0
    %v122 = vadd.f32 %v99, %v121
    %123 = vdwg.mxu0
    %v124 = vmax.f32 %v122, 0.0
    %v125 = vld [vmem:[#allocation5 + $0x60] sm:$0xff]
    %v126 = vld [vmem:[#allocation5 + $0x68] sm:$0xff]
    %v127 = vld [vmem:[#allocation5 + $0x70] sm:$0xff]
    %v128 = vld [vmem:[#allocation5 + $0x78] sm:$0xff]
    %v129 = vld [vmem:[#allocation7 + $0x2] sm:$0x1]
    %v130 = vperm.slane %v129, 0
    %v132 = vsel %vm65, %v124, 0
    %134 = vmatpush.msra.mxu0 0.0
    %135 = vmatpush.msra.mxu0 0.0
    %136 = vmatpush.msra.mxu0 0.0
    %137 = vmatpush.msra.mxu0 0.0
    %138 = vmatpush.msra.mxu0 0.0
    %139 = vmatpush.msra.mxu0 0.0
    %140 = vmatpush.msra.mxu0 0.0
    %141 = vmatpush.msra.mxu0 0.0
    %142 = vmatpush.msra.mxu0 0.0
    %143 = vmatpush.msra.mxu0 0.0
    %144 = vmatpush.msra.mxu0 0.0
    %145 = vmatpush.msra.mxu0 0.0
    %146 = vmatpush.msra.mxu0 %v128
    %147 = vmatpush.msra.mxu0 %v127
    %148 = vmatpush.msra.mxu0 %v126
    %149 = vmatpush.msra.mxu0 %v125
    %150 = vmatmul.f32.gmra.mxu0 %v132
    %v151 = vpop.f32.mrf.mxu0
    %v152 = vadd.f32 %v130, %v151
    %153 = vdwg.mxu0
    %v154 = vlaneseq
    %v155 = vand.u32 %v154, 127
    %vm156 = vcmp.lt.s32.totalorder %v155, 8
    %v157 = vsel %vm156, %v152, 0.0
    %158 = vadd.xlane.f32.xlu0 %v157
    %v159 = vpop.xlane.xlu0 %158
    %v160 = vmul.f32 %v159, 0.125
    %162 = vset.pattern.permute.xlu0 8
    %163 = vperm.xlu0 %162, %v152
    %v164 = vpop.permute.xlu0 %163
    %v166 = vadd.f32 %v152, %v164
    %v167 = vsub.f32 %v166, %v160
    %168 = vst [vmem:[#allocation8] sm:$0xff] %v167
    // Predicated region
    $region26: #{dueling_qnet_forward.1} parent=1 // pred_check
      _
    $region27: #{dueling_qnet_forward.1} parent=1 // pred_check_branch
      %170 = sbr.rel (0) target = $region29
    $region28: #{dueling_qnet_forward.1} parent=1 // pred_region
      %172 = vsyncadd [#allocation4], 0
      %s174 = sshll.u32 [#allocation8], 4
      %s175 = int_to_ptr.vmem [resolvable:$true] %s174
      %s176 = sshll.u32 %s3, 4
      %s177 = int_to_ptr.hbm [resolvable:$true] %s176
      %179 = dma.vmem_to_hbm [thread:$0]  %s175, 128, %s177, [#allocation4]
    $region29: #{dueling_qnet_forward.1} parent=1 // pred_fallthru
      _
    // Predicated region
    $region30: #{dueling_qnet_forward.1} parent=1 // pred_check
      _
    $region31: #{dueling_qnet_forward.1} parent=1 // pred_check_branch
      %181 = sbr.rel (0) target = $region33
    $region32: #{dueling_qnet_forward.1} parent=1 // pred_region
      %183 = dma.done [#allocation4], 128
    $region33: #{dueling_qnet_forward.1} parent=1 // pred_fallthru
      _
    %184 = vsyncpa [#allocation3], 1
    %185 = vsyncpa [#allocation6], 1
    %186 = vsyncpa [#allocation4], 1

</llo_original>
